<compile_context>
chip_gen: v6e
topology: v6e:2x2x1
jax: 0.10.0
libtpu: 0.0.40
codegen_flags: <defaults>
</compile_context>

<pallas_src>
import functools
import math

import jax
import jax.numpy as jnp
from jax import lax
from jax.experimental import pallas as pl
from jax.experimental.pallas import tpu as pltpu


def _round_up(n, m):
    return ((n + m - 1) // m) * m


def _ddw_kernel(x_ref, p_ref, shift_ref, o_ref, *,
                K, pad, L, Lw, L_out, C, Cr, block_b):
    """One batch block: (block_b*C, Lw) rows of x -> (block_b*C, L_out) rows of out."""
    N = block_b * C
    off_w2 = Cr                       # packed param columns: [w1^T | w2 taps | b2 | bias]
    off_b2 = Cr + K * Cr
    off_bias = off_b2 + K

    p = p_ref[...]                                        # (N, P) packed per-row params, f32
    xb = x_ref[...].astype(jnp.float32)                   # (N, Lw) lane-dense block

    # AdaptiveAvgPool1d(1): per-row mean over the true length L (any wrapper
    # zero rows/columns contribute 0 to the sum).
    pooled = jnp.sum(xb, axis=1, keepdims=True) * (1.0 / L)           # (N, 1)

    # conv1 (quaternion 1x1, BN scale folded into w1) + BN shift + ReLU,
    # batched over the whole block with ONE segmented-sum matmul.
    contrib = pooled * p[:, 0:Cr]                                     # (N, Cr)
    nidx = lax.broadcasted_iota(jnp.int32, (block_b, N), 1)
    bstart = lax.broadcasted_iota(jnp.int32, (block_b, N), 0) * C
    gather_mat = jnp.where((nidx >= bstart) & (nidx < bstart + C), 1.0, 0.0)
    y = jnp.dot(gather_mat, contrib, preferred_element_type=jnp.float32)
    y = jnp.maximum(y + shift_ref[...], 0.0)                          # (block_b, Cr)

    # Broadcast each sample's reduced vector back to its C rows (one small matmul,
    # no cross-lane reshapes).
    nidx_r = lax.broadcasted_iota(jnp.int32, (N, block_b), 0)
    bstart_r = lax.broadcasted_iota(jnp.int32, (N, block_b), 1) * C
    scatter_mat = jnp.where((nidx_r >= bstart_r) & (nidx_r < bstart_r + C), 1.0, 0.0)
    y_rows = jnp.dot(scatter_mat, y, preferred_element_type=jnp.float32)  # (N, Cr)

    # conv2 per tap (row-wise dot over Cr lanes) + dynamic depthwise conv.
    # No pre-padded input: each tap is a lane roll of the dense tile plus an
    # iota edge mask, so input DMA and stores stay lane-dense.
    lane = lax.broadcasted_iota(jnp.int32, (N, Lw), 1)
    acc = None
    for k in range(K):
        w2k = p[:, off_w2 + k * Cr: off_w2 + (k + 1) * Cr]            # (N, Cr)
        t_k = (jnp.sum(y_rows * w2k, axis=1, keepdims=True)
               + p[:, off_b2 + k: off_b2 + k + 1])                    # (N, 1) dynamic tap weight
        s = k - pad                                                   # shift into (unpadded) x
        if s == 0:
            xs = xb
        else:
            xs = pltpu.roll(xb, shift=(-s) % Lw, axis=1)
            xs = jnp.where((lane + s >= 0) & (lane + s < L), xs, 0.0)
        term = t_k * xs
        acc = term if acc is None else acc + term
    acc = acc + p[:, off_bias:off_bias + 1]                           # depthwise bias
    if L_out != Lw:
        acc = acc[:, :L_out]
    o_ref[...] = acc.astype(o_ref.dtype)


def dynamic_dw_conv(x, w1, bn_gamma, bn_beta, bn_mean, bn_var, w2, b2, bias,
                    *, kernel_size, stride=1, padding=1, eps=1e-5, block_b=None):
    """Fused DynamicDWConv forward (BatchNorm in inference mode, stride=1)."""
    assert stride == 1, "only stride=1 implemented"
    B, C, L = x.shape
    K = kernel_size
    pad = padding
    L_out = L + 2 * pad - K + 1
    assert L_out > 0, "kernel_size/padding give empty output"
    Cr = w1.shape[0]
    itemsize = jnp.dtype(x.dtype).itemsize

    # Working lane width: == L except in the unusual case 2*pad + 1 > K.
    Lw = max(L, L_out)
    lanes_in = _round_up(Lw, 128)
    lanes_out = _round_up(L_out, 128)

    # ---- batch-block choice ----------------------------------------------------
    # Per flattened row: double-buffered in+out blocks (lane-padded) + f32 temps.
    per_row = 2 * (lanes_in + lanes_out) * itemsize + 4 * lanes_in * 4
    m = 8 // math.gcd(C, 8)          # block_b granularity -> sublane-aligned row blocks
    if block_b is None:
        budget_rows = max(C, (22 * 2**20) // per_row)       # stay well under 32 MiB VMEM (v7x)
        target_rows = max(C, (4 * 2**20) // (lanes_in * itemsize))   # ~4 MiB blocks ~ roofline
        emax = max(1, math.isqrt((2 * 2**20) // (8 * C)))    # keep gather/scatter mats small
        bb = max(1, min(budget_rows // C, target_rows // C, emax, B))
        if B >= 2:
            bb = min(bb, -(-B // 2))                         # >= 2 grid steps (dual-TC v7x)
        block_b = max(m, _round_up(bb, m))
        nb = -(-B // block_b)
        if nb > 1 and nb % 2 == 1:                           # prefer even step count (v7x)
            block_b = max(m, _round_up(-(-B // (nb + 1)), m))
    else:
        block_b = max(m, _round_up(block_b, m))

    Bp = _round_up(B, block_b)       # awkward batch sizes: zero-pad B, slice tail off below
    num_blocks = Bp // block_b
    N = block_b * C

    # ---- inputs: NO sequence-axis pad in the common case (K == 2*pad + 1) -------
    x2 = x.reshape(B * C, L)
    if Bp != B or Lw != L:
        x2 = jnp.pad(x2, ((0, (Bp - B) * C), (0, Lw - L)))

    # ---- fold BN into conv1; pack all per-channel constants into one operand ----
    f32 = jnp.float32
    inv_std = 1.0 / jnp.sqrt(bn_var.astype(f32) + eps)
    g = bn_gamma.astype(f32) * inv_std
    w1t = (w1.astype(f32) * g[:, None]).T                            # (C, Cr), BN scale folded
    shift_row = (bn_beta.astype(f32) - bn_mean.astype(f32) * g)[None, :]    # (1, Cr)
    # PyTorch conv2 output channel o = c*K + k  ->  per-channel, k-major tap layout.
    w2_ck = w2.astype(f32).reshape(C, K, Cr).reshape(C, K * Cr)      # (C, K*Cr)
    b2_ck = b2.astype(f32).reshape(C, K)                             # (C, K)
    per_chan = jnp.concatenate(
        [w1t, w2_ck, b2_ck, bias.astype(f32)[:, None]], axis=1)      # (C, P)
    params = jnp.tile(per_chan, (block_b, 1))                        # (N, P)
    P = per_chan.shape[1]

    # ---- VMEM budget: lane padding + double buffering + f32 temporaries ---------
    e_bytes = 2 * N * block_b * 4
    small_bytes = 2 * (N * _round_up(P, 128) + 8 * _round_up(Cr, 128)) * 4
    vmem_limit = int(min(32 * 2**20,
                         max(8 * 2**20,
                             N * per_row + e_bytes + small_bytes + 2 * 2**20)))

    kernel = functools.partial(
        _ddw_kernel, K=K, pad=pad, L=L, Lw=Lw, L_out=L_out, C=C, Cr=Cr,
        block_b=block_b)

    out2 = pl.pallas_call(
        kernel,
        out_shape=jax.ShapeDtypeStruct((Bp * C, L_out), x.dtype),
        grid=(num_blocks,),
        in_specs=[
            pl.BlockSpec((N, Lw), lambda i: (i, 0)),     # x rows, unpadded, lane-dense
            pl.BlockSpec((N, P), lambda i: (0, 0)),      # packed per-row params (resident)
            pl.BlockSpec((1, Cr), lambda i: (0, 0)),     # BN shift row
        ],
        out_specs=pl.BlockSpec((N, L_out), lambda i: (i, 0)),
        compiler_params=pltpu.CompilerParams(
            dimension_semantics=("parallel",),
            vmem_limit_bytes=vmem_limit),
    )(x2, params, shift_row)

    out = out2.reshape(Bp, C, L_out)
    return out if Bp == B else out[:B]


def quaternion_1x1_weight(key, in_ch, out_ch, scale=0.2):
    """Real-valued weight of a quaternion 1x1 conv (Hamilton-product assembly)."""
    assert in_ch % 4 == 0 and out_ch % 4 == 0
    o4, i4 = out_ch // 4, in_ch // 4
    kr, ki, kj, kk = jax.random.split(key, 4)
    r = scale * jax.random.normal(kr, (o4, i4), jnp.float32)
    i = scale * jax.random.normal(ki, (o4, i4), jnp.float32)
    j = scale * jax.random.normal(kj, (o4, i4), jnp.float32)
    k = scale * jax.random.normal(kk, (o4, i4), jnp.float32)
    row_r = jnp.concatenate([r, -i, -j, -k], axis=1)
    row_i = jnp.concatenate([i, r, -k, j], axis=1)
    row_j = jnp.concatenate([j, k, r, -i], axis=1)
    row_k = jnp.concatenate([k, -j, i, r], axis=1)
    return jnp.concatenate([row_r, row_i, row_j, row_k], axis=0)     # (out_ch, in_ch)


def reference(x, w1, bn_gamma, bn_beta, bn_mean, bn_var, w2, b2, bias,
              *, kernel_size, padding, eps=1e-5):
    """Pure-JAX reference matching the PyTorch forward (BN in eval mode)."""
    B, C, L = x.shape
    K = kernel_size
    pooled = jnp.mean(x, axis=2, keepdims=True)                      # (B, C, 1)
    y = jnp.einsum('rc,bcl->brl', w1, pooled)
    y = (y - bn_mean[None, :, None]) / jnp.sqrt(bn_var + eps)[None, :, None]
    y = y * bn_gamma[None, :, None] + bn_beta[None, :, None]
    y = jnp.maximum(y, 0.0)
    w = jnp.einsum('or,brl->bol', w2, y) + b2[None, :, None]         # (B, C*K, 1)
    w = w.reshape(B, C, K)                                           # weight.view(b*dim, 1, K)
    xp = jnp.pad(x, ((0, 0), (0, 0), (padding, padding)))
    L_out = L + 2 * padding - K + 1
    out = jnp.zeros((B, C, L_out), jnp.float32)
    for k in range(K):
        out = out + w[:, :, k:k + 1] * xp[:, :, k:k + L_out]
    return out + bias[None, :, None]


if __name__ == "__main__":
    # seq=128, K=3, pad=1 -> L_out = 128: lane-dense, unpadded input blocks.
    B, dim, seq = 4, 16, 128
    kernel_size, reduction, padding = 3, 4, 1
    cr = dim // reduction

    root = jax.random.PRNGKey(0)
    kx, kw1, kw2, kb2, kb, kg, kbt, km, kv = jax.random.split(root, 9)
    x = jax.random.normal(kx, (B, dim, seq), jnp.float32)

    w1 = quaternion_1x1_weight(kw1, dim, cr)                 # conv1 (bias=False)
    w2 = quaternion_1x1_weight(kw2, cr, dim * kernel_size)   # conv2
    b2 = 0.05 * jax.random.normal(kb2, (dim * kernel_size,), jnp.float32)
    bias = 0.05 * jax.random.normal(kb, (dim,), jnp.float32)
    # Non-trivial (running) BN stats so the scale/shift folding is exercised.
    bn_gamma = 1.0 + 0.1 * jax.random.normal(kg, (cr,), jnp.float32)
    bn_beta = 0.1 * jax.random.normal(kbt, (cr,), jnp.float32)
    bn_mean = 0.1 * jax.random.normal(km, (cr,), jnp.float32)
    bn_var = 0.5 + jnp.abs(jax.random.normal(kv, (cr,), jnp.float32))

    out = dynamic_dw_conv(x, w1, bn_gamma, bn_beta, bn_mean, bn_var, w2, b2, bias,
                          kernel_size=kernel_size, padding=padding)
    out = jax.block_until_ready(out)

    ref = reference(x, w1, bn_gamma, bn_beta, bn_mean, bn_var, w2, b2, bias,
                    kernel_size=kernel_size, padding=padding)
    L_out = seq + 2 * padding - kernel_size + 1
    assert out.shape == (B, dim, L_out)
    assert jnp.allclose(out, ref, atol=2e-4, rtol=2e-4), \
        float(jnp.max(jnp.abs(out - ref)))

    # bf16 HBM I/O path (recommended: the kernel is HBM-bound on all
    # generations); in-kernel compute stays f32.
    out_bf16 = dynamic_dw_conv(x.astype(jnp.bfloat16), w1, bn_gamma, bn_beta,
                               bn_mean, bn_var, w2, b2, bias,
                               kernel_size=kernel_size, padding=padding)
    out_bf16 = jax.block_until_ready(out_bf16)
    assert out_bf16.shape == (B, dim, L_out)
    assert out_bf16.dtype == jnp.bfloat16
    assert jnp.allclose(out_bf16.astype(jnp.float32), ref, atol=5e-2, rtol=5e-2)

    print("KERNEL_OK")
</pallas_src>

<mosaic_0001>
module attributes {stable_mosaic.version = 11 : i64} {
  func.func @_ddw_kernel(%arg0: i32, %arg1: memref<32x128xf32, #tpu.memory_space<vmem>>, %arg2: memref<32x20xf32, #tpu.memory_space<vmem>>, %arg3: memref<1x4xf32, #tpu.memory_space<vmem>>, %arg4: memref<32x128xf32, #tpu.memory_space<vmem>>) attributes {dimension_semantics = [#tpu.dimension_semantics<parallel>], iteration_bounds = array<i64: 2>, scalar_prefetch = 0 : i64, scratch_operands = 0 : i64, tpu.core_type = #tpu.core_type<tc>, window_params = [{transform_indices = @transform_0, window_bounds = array<i64: 32, 128>}, {pipeline_mode = #tpu.pipeline_mode<synchronous>, transform_indices = @transform_1, window_bounds = array<i64: 32, 20>}, {pipeline_mode = #tpu.pipeline_mode<synchronous>, transform_indices = @transform_2, window_bounds = array<i64: 1, 4>}, {transform_indices = @transform_3, window_bounds = array<i64: 32, 128>}]} {
    %c0 = arith.constant 0 : index
    %c0_0 = arith.constant 0 : index
    %0 = vector.load %arg2[%c0, %c0_0] : memref<32x20xf32, #tpu.memory_space<vmem>>, vector<32x20xf32>
    %c0_1 = arith.constant 0 : index
    %c0_2 = arith.constant 0 : index
    %1 = vector.load %arg1[%c0_1, %c0_2] : memref<32x128xf32, #tpu.memory_space<vmem>>, vector<32x128xf32>
    %cst = arith.constant dense<0.000000e+00> : vector<32xf32>
    %2 = vector.multi_reduction <add>, %1, %cst [1] : vector<32x128xf32> to vector<32xf32>
    %3 = vector.shape_cast %2 : vector<32xf32> to vector<32x1xf32>
    %cst_3 = arith.constant 7.812500e-03 : f32
    %4 = vector.broadcast %cst_3 : f32 to vector<32x1xf32>
    %5 = arith.mulf %3, %4 : vector<32x1xf32>
    %6 = vector.extract_strided_slice %0 {offsets = [0, 0], sizes = [32, 4], strides = [1, 1]} : vector<32x20xf32> to vector<32x4xf32>
    %7 = vector.broadcast %5 : vector<32x1xf32> to vector<32x4xf32>
    %8 = arith.mulf %7, %6 : vector<32x4xf32>
    %9 = tpu.iota {dimensions = array<i32: 1>} : vector<2x32xi32>
    %10 = tpu.iota {dimensions = array<i32: 0>} : vector<2x32xi32>
    %c16_i32 = arith.constant 16 : i32
    %11 = vector.broadcast %c16_i32 : i32 to vector<2x32xi32>
    %12 = arith.muli %10, %11 : vector<2x32xi32>
    %13 = arith.cmpi sge, %9, %12 : vector<2x32xi32>
    %c16_i32_4 = arith.constant 16 : i32
    %14 = vector.broadcast %c16_i32_4 : i32 to vector<2x32xi32>
    %15 = arith.addi %12, %14 : vector<2x32xi32>
    %16 = arith.cmpi slt, %9, %15 : vector<2x32xi32>
    %17 = arith.andi %13, %16 : vector<2x32xi1>
    %cst_5 = arith.constant 1.000000e+00 : f32
    %cst_6 = arith.constant 0.000000e+00 : f32
    %18 = vector.broadcast %cst_5 : f32 to vector<2x32xf32>
    %19 = vector.broadcast %cst_6 : f32 to vector<2x32xf32>
    %20 = arith.select %17, %18, %19 : vector<2x32xi1>, vector<2x32xf32>
    %cst_7 = arith.constant dense<0.000000e+00> : vector<2x4xf32>
    %21 = tpu.matmul %20, %8, %cst_7 {dimension_numbers = #tpu.dot_dimension_numbers<[1], [0], [0], [1], [0, 0, 1, 1], [], []>} : vector<2x32xf32>, vector<32x4xf32>, vector<2x4xf32> -> vector<2x4xf32>
    %c0_8 = arith.constant 0 : index
    %c0_9 = arith.constant 0 : index
    %22 = vector.load %arg3[%c0_8, %c0_9] : memref<1x4xf32, #tpu.memory_space<vmem>>, vector<1x4xf32>
    %23 = vector.broadcast %22 : vector<1x4xf32> to vector<2x4xf32>
    %24 = arith.addf %21, %23 : vector<2x4xf32>
    %cst_10 = arith.constant 0.000000e+00 : f32
    %25 = vector.broadcast %cst_10 : f32 to vector<2x4xf32>
    %26 = arith.maximumf %24, %25 : vector<2x4xf32>
    %27 = tpu.iota {dimensions = array<i32: 0>} : vector<32x2xi32>
    %28 = tpu.iota {dimensions = array<i32: 1>} : vector<32x2xi32>
    %c16_i32_11 = arith.constant 16 : i32
    %29 = vector.broadcast %c16_i32_11 : i32 to vector<32x2xi32>
    %30 = arith.muli %28, %29 : vector<32x2xi32>
    %31 = arith.cmpi sge, %27, %30 : vector<32x2xi32>
    %c16_i32_12 = arith.constant 16 : i32
    %32 = vector.broadcast %c16_i32_12 : i32 to vector<32x2xi32>
    %33 = arith.addi %30, %32 : vector<32x2xi32>
    %34 = arith.cmpi slt, %27, %33 : vector<32x2xi32>
    %35 = arith.andi %31, %34 : vector<32x2xi1>
    %cst_13 = arith.constant 1.000000e+00 : f32
    %cst_14 = arith.constant 0.000000e+00 : f32
    %36 = vector.broadcast %cst_13 : f32 to vector<32x2xf32>
    %37 = vector.broadcast %cst_14 : f32 to vector<32x2xf32>
    %38 = arith.select %35, %36, %37 : vector<32x2xi1>, vector<32x2xf32>
    %cst_15 = arith.constant dense<0.000000e+00> : vector<32x4xf32>
    %39 = tpu.matmul %38, %26, %cst_15 {dimension_numbers = #tpu.dot_dimension_numbers<[1], [0], [0], [1], [0, 0, 1, 1], [], []>} : vector<32x2xf32>, vector<2x4xf32>, vector<32x4xf32> -> vector<32x4xf32>
    %40 = tpu.iota {dimensions = array<i32: 1>} : vector<32x128xi32>
    %41 = vector.extract_strided_slice %0 {offsets = [0, 4], sizes = [32, 4], strides = [1, 1]} : vector<32x20xf32> to vector<32x4xf32>
    %42 = arith.mulf %39, %41 : vector<32x4xf32>
    %cst_16 = arith.constant dense<0.000000e+00> : vector<32xf32>
    %43 = vector.multi_reduction <add>, %42, %cst_16 [1] : vector<32x4xf32> to vector<32xf32>
    %44 = vector.shape_cast %43 : vector<32xf32> to vector<32x1xf32>
    %45 = vector.extract_strided_slice %0 {offsets = [0, 16], sizes = [32, 1], strides = [1, 1]} : vector<32x20xf32> to vector<32x1xf32>
    %46 = arith.addf %44, %45 : vector<32x1xf32>
    %c1_i32 = arith.constant 1 : i32
    %47 = tpu.dynamic_rotate %1 by %c1_i32 dim 1 : vector<32x128xf32>, i32 -> vector<32x128xf32>
    %c-1_i32 = arith.constant -1 : i32
    %48 = vector.broadcast %c-1_i32 : i32 to vector<32x128xi32>
    %49 = arith.addi %40, %48 : vector<32x128xi32>
    %c0_i32 = arith.constant 0 : i32
    %50 = vector.broadcast %c0_i32 : i32 to vector<32x128xi32>
    %51 = arith.cmpi sge, %49, %50 : vector<32x128xi32>
    %c-1_i32_17 = arith.constant -1 : i32
    %52 = vector.broadcast %c-1_i32_17 : i32 to vector<32x128xi32>
    %53 = arith.addi %40, %52 : vector<32x128xi32>
    %c128_i32 = arith.constant 128 : i32
    %54 = vector.broadcast %c128_i32 : i32 to vector<32x128xi32>
    %55 = arith.cmpi slt, %53, %54 : vector<32x128xi32>
    %56 = arith.andi %51, %55 : vector<32x128xi1>
    %cst_18 = arith.constant 0.000000e+00 : f32
    %57 = vector.broadcast %cst_18 : f32 to vector<32x128xf32>
    %58 = arith.select %56, %47, %57 : vector<32x128xi1>, vector<32x128xf32>
    %59 = vector.broadcast %46 : vector<32x1xf32> to vector<32x128xf32>
    %60 = arith.mulf %59, %58 : vector<32x128xf32>
    %61 = vector.extract_strided_slice %0 {offsets = [0, 8], sizes = [32, 4], strides = [1, 1]} : vector<32x20xf32> to vector<32x4xf32>
    %62 = arith.mulf %39, %61 : vector<32x4xf32>
    %cst_19 = arith.constant dense<0.000000e+00> : vector<32xf32>
    %63 = vector.multi_reduction <add>, %62, %cst_19 [1] : vector<32x4xf32> to vector<32xf32>
    %64 = vector.shape_cast %63 : vector<32xf32> to vector<32x1xf32>
    %65 = vector.extract_strided_slice %0 {offsets = [0, 17], sizes = [32, 1], strides = [1, 1]} : vector<32x20xf32> to vector<32x1xf32>
    %66 = arith.addf %64, %65 : vector<32x1xf32>
    %67 = vector.broadcast %66 : vector<32x1xf32> to vector<32x128xf32>
    %68 = arith.mulf %67, %1 : vector<32x128xf32>
    %69 = arith.addf %60, %68 : vector<32x128xf32>
    %70 = vector.extract_strided_slice %0 {offsets = [0, 12], sizes = [32, 4], strides = [1, 1]} : vector<32x20xf32> to vector<32x4xf32>
    %71 = arith.mulf %39, %70 : vector<32x4xf32>
    %cst_20 = arith.constant dense<0.000000e+00> : vector<32xf32>
    %72 = vector.multi_reduction <add>, %71, %cst_20 [1] : vector<32x4xf32> to vector<32xf32>
    %73 = vector.shape_cast %72 : vector<32xf32> to vector<32x1xf32>
    %74 = vector.extract_strided_slice %0 {offsets = [0, 18], sizes = [32, 1], strides = [1, 1]} : vector<32x20xf32> to vector<32x1xf32>
    %75 = arith.addf %73, %74 : vector<32x1xf32>
    %c127_i32 = arith.constant 127 : i32
    %76 = tpu.dynamic_rotate %1 by %c127_i32 dim 1 : vector<32x128xf32>, i32 -> vector<32x128xf32>
    %c1_i32_21 = arith.constant 1 : i32
    %77 = vector.broadcast %c1_i32_21 : i32 to vector<32x128xi32>
    %78 = arith.addi %40, %77 : vector<32x128xi32>
    %c0_i32_22 = arith.constant 0 : i32
    %79 = vector.broadcast %c0_i32_22 : i32 to vector<32x128xi32>
    %80 = arith.cmpi sge, %78, %79 : vector<32x128xi32>
    %c1_i32_23 = arith.constant 1 : i32
    %81 = vector.broadcast %c1_i32_23 : i32 to vector<32x128xi32>
    %82 = arith.addi %40, %81 : vector<32x128xi32>
    %c128_i32_24 = arith.constant 128 : i32
    %83 = vector.broadcast %c128_i32_24 : i32 to vector<32x128xi32>
    %84 = arith.cmpi slt, %82, %83 : vector<32x128xi32>
    %85 = arith.andi %80, %84 : vector<32x128xi1>
    %cst_25 = arith.constant 0.000000e+00 : f32
    %86 = vector.broadcast %cst_25 : f32 to vector<32x128xf32>
    %87 = arith.select %85, %76, %86 : vector<32x128xi1>, vector<32x128xf32>
    %88 = vector.broadcast %75 : vector<32x1xf32> to vector<32x128xf32>
    %89 = arith.mulf %88, %87 : vector<32x128xf32>
    %90 = arith.addf %69, %89 : vector<32x128xf32>
    %91 = vector.extract_strided_slice %0 {offsets = [0, 19], sizes = [32, 1], strides = [1, 1]} : vector<32x20xf32> to vector<32x1xf32>
    %92 = vector.broadcast %91 : vector<32x1xf32> to vector<32x128xf32>
    %93 = arith.addf %90, %92 : vector<32x128xf32>
    %c0_26 = arith.constant 0 : index
    %c0_27 = arith.constant 0 : index
    %94 = vector.load %arg4[%c0_26, %c0_27] : memref<32x128xf32, #tpu.memory_space<vmem>>, vector<32x128xf32>
    tpu.vector_store %arg4[%c0_26, %c0_27], %93 {strides = array<i32>} : memref<32x128xf32, #tpu.memory_space<vmem>>, vector<32x128xf32>,
    return
  }
  func.func @transform_0(%arg0: i32) -> (i32, i32) {
    %c0_i32 = arith.constant 0 : i32
    %c0_i32_0 = arith.constant 0 : i32
    return %arg0, %c0_i32 : i32, i32
  }
  func.func @transform_1(%arg0: i32) -> (i32, i32) {
    %c0_i32 = arith.constant 0 : i32
    %c0_i32_0 = arith.constant 0 : i32
    %c0_i32_1 = arith.constant 0 : i32
    return %c0_i32, %c0_i32_0 : i32, i32
  }
  func.func @transform_2(%arg0: i32) -> (i32, i32) {
    %c0_i32 = arith.constant 0 : i32
    %c0_i32_0 = arith.constant 0 : i32
    %c0_i32_1 = arith.constant 0 : i32
    return %c0_i32, %c0_i32_0 : i32, i32
  }
  func.func @transform_3(%arg0: i32) -> (i32, i32) {
    %c0_i32 = arith.constant 0 : i32
    %c0_i32_0 = arith.constant 0 : i32
    return %arg0, %c0_i32 : i32, i32
  }
}

</mosaic_0001>

<llo_original>
// kernel: tpu_custom_call.1
$region0: #{tpu_custom_call.1}
  #allocation0 [shape = 'u32[]', space=smem, size = 0x4, offset = 0x4, fixed_abs, tag = 'smem constant byte address 0x4 - core index']
  #allocation1 [shape = 'u32[144,128]{1,0:T(1,128)}', space=vmem, size = 0x12000, scoped, tag = 'internal scratch']
  %s0 = inlined_call_operand.hbm [shape: f32[64,128], index: 0, kind: input, shape index: {}]
  %s1 = inlined_call_operand.vmem [shape: f32[32,20], index: 1, kind: input, shape index: {}]
  %s2 = inlined_call_operand.vmem [shape: f32[1,4], index: 2, kind: input, shape index: {}]
  %s3 = inlined_call_operand.hbm [shape: f32[64,128], index: 3, kind: output, shape index: {}]
  %s4 = sld [smem:[#allocation0]]
  $region49: #{tpu_custom_call.1} parent=0
    _
  %s6 = ssub.s32 1, %s4
  %s7 = scalar_select 0, %s6, %s4
  $region1: #{tpu_custom_call.1} parent=0
    #allocation2 [shape = 'u8[32768]{0}', space=vmem, size = 0x8000, scoped, tag = 'input window, operand 0']
    #allocation3 [shape = 's32[2]{0}', space=sflag, size = 0x8, scoped, tag = 'scoped memory for tpu_custom_call.1']
    #allocation4 [shape = 's32[2]{0}', space=sflag, size = 0x8, scoped, tag = 'scoped memory for tpu_custom_call.1']
    #allocation5 [shape = 'u8[32768]{0}', space=vmem, size = 0x8000, scoped, tag = 'output window, operand 0']
    %8 = vsyncpa [#allocation3], 0
    %s9 = scalar_lea.sflag [#allocation3], 1
    %10 = vsyncpa %s9, 0
    %11 = vsyncpa [#allocation4], 0
    %s12 = scalar_lea.sflag [#allocation4], 1
    %13 = vsyncpa %s12, 0
    loop: start=0, step=1, limit=4
    $region2: #{tpu_custom_call.1} parent=1 // loop_pre_header
      _
    $region3: #{tpu_custom_call.1} parent=1 // loop_header
      %s15 = sphi 0, %s19
      %p16 = scmp.ge.s32.totalorder %s15, 4
      %s25 = sphi 0, %s27
      %s28 = sphi 0, %s25
      %s29 = sphi 0, %s28
      %s45 = sphi 0, %s29
      %s49 = sphi 0, %s49
      %s51 = sphi 0, %s49
      %s52 = sphi 0, %s51
      %s66 = sphi 0, %s52
      %s70 = sphi 0, %s70
      %s72 = sphi 0, %s70
      %s73 = sphi 0, %s72
      %s87 = sphi 0, %s73
      %s93 = sphi 0, %s95
      %s96 = sphi 0, %s93
      %s97 = sphi 0, %s96
      %s113 = sphi 0, %s97
    $region4: #{tpu_custom_call.1} parent=1 // loop_header_branch
      %18 = sbr.rel (%p16) target = $region8
    $region5: #{tpu_custom_call.1} parent=1 // loop_body
      %s20 = ssub.s32 %s15, 1
      %s21 = ssub.s32 %s15, 2
      %s22 = sadd.s32 %s15, 1
      %s23 = ssub.s32 %s15, %s22
      %p24 = scmp.eq.s32.totalorder %s23, 0
      %s26 = sadd.s32 %s25, 1
      %s27 = scalar_select %p24, %s25, %s26
      %p30 = pneg %p24
      %p31 = scmp.eq.s32.totalorder %s15, 1
      %p32 = por %p30, %p31
      %p33 = scmp.ne.s32.totalorder %s25, %s28
      %p34 = scmp.eq.s32.totalorder %s15, 0
      %p35 = por %p33, %p34
      %p36 = scmp.ne.s32.totalorder %s25, %s28
      %p37 = scmp.eq.s32.totalorder %s20, 1
      %p38 = por %p36, %p37
      %p39 = scmp.ne.s32.totalorder %s28, %s29
      %p40 = scmp.eq.s32.totalorder %s20, 0
      %p41 = por %p39, %p40
      %p42 = scmp.ne.s32.totalorder %s28, %s29
      %p43 = scmp.eq.s32.totalorder %s21, 1
      %p44 = por %p42, %p43
      %p46 = scmp.ne.s32.totalorder %s29, %s45
      %p47 = scmp.eq.s32.totalorder %s21, 0
      %p48 = por %p46, %p47
      %s50 = sadd.s32 %s49, 1
      %p53 = scmp.eq.s32.totalorder %s15, 1
      %p54 = scmp.ne.s32.totalorder %s49, %s51
      %p55 = scmp.eq.s32.totalorder %s15, 0
      %p56 = por %p54, %p55
      %p57 = scmp.ne.s32.totalorder %s49, %s51
      %p58 = scmp.eq.s32.totalorder %s20, 1
      %p59 = por %p57, %p58
      %p60 = scmp.ne.s32.totalorder %s51, %s52
      %p61 = scmp.eq.s32.totalorder %s20, 0
      %p62 = por %p60, %p61
      %p63 = scmp.ne.s32.totalorder %s51, %s52
      %p64 = scmp.eq.s32.totalorder %s21, 1
      %p65 = por %p63, %p64
      %p67 = scmp.ne.s32.totalorder %s52, %s66
      %p68 = scmp.eq.s32.totalorder %s21, 0
      %p69 = por %p67, %p68
      %s71 = sadd.s32 %s70, 1
      %p74 = scmp.eq.s32.totalorder %s15, 1
      %p75 = scmp.ne.s32.totalorder %s70, %s72
      %p76 = scmp.eq.s32.totalorder %s15, 0
      %p77 = por %p75, %p76
      %p78 = scmp.ne.s32.totalorder %s70, %s72
      %p79 = scmp.eq.s32.totalorder %s20, 1
      %p80 = por %p78, %p79
      %p81 = scmp.ne.s32.totalorder %s72, %s73
      %p82 = scmp.eq.s32.totalorder %s20, 0
      %p83 = por %p81, %p82
      %p84 = scmp.ne.s32.totalorder %s72, %s73
      %p85 = scmp.eq.s32.totalorder %s21, 1
      %p86 = por %p84, %p85
      %p88 = scmp.ne.s32.totalorder %s73, %s87
      %p89 = scmp.eq.s32.totalorder %s21, 0
      %p90 = por %p88, %p89
      %s91 = ssub.s32 %s15, %s22
      %p92 = scmp.eq.s32.totalorder %s91, 0
      %s94 = sadd.s32 %s93, 1
      %s95 = scalar_select %p92, %s93, %s94
      %p98 = pneg %p92
      %p99 = scmp.eq.s32.totalorder %s15, 1
      %p100 = por %p98, %p99
      %p101 = scmp.ne.s32.totalorder %s93, %s96
      %p102 = scmp.eq.s32.totalorder %s15, 0
      %p103 = por %p101, %p102
      %p104 = scmp.ne.s32.totalorder %s93, %s96
      %p105 = scmp.eq.s32.totalorder %s20, 1
      %p106 = por %p104, %p105
      %p107 = scmp.ne.s32.totalorder %s96, %s97
      %p108 = scmp.eq.s32.totalorder %s20, 0
      %p109 = por %p107, %p108
      %p110 = scmp.ne.s32.totalorder %s96, %s97
      %p111 = scmp.eq.s32.totalorder %s21, 1
      %p112 = por %p110, %p111
      %p114 = scmp.ne.s32.totalorder %s97, %s113
      %p115 = scmp.eq.s32.totalorder %s21, 0
      %p116 = por %p114, %p115
      %p117 = scmp.le.s32.totalorder 1, %s15
      %p118 = scmp.lt.s32.totalorder %s15, 3
      %p119 = pnand %p117, %p118
      %p120 = pneg %p119
      // Predicated region
      $region9: #{tpu_custom_call.1} parent=5 // pred_check
        _
      $region10: #{tpu_custom_call.1} parent=5 // pred_check_branch
        %122 = sbr.rel (%p119) target = $region12
      $region11: #{tpu_custom_call.1} parent=5 // pred_region
        %s123 = ssub.s32 %s15, 1
        // Predicated region
        $region13: #{tpu_custom_call.1} parent=11 // pred_check
          %p124 = pneg %p62
        $region14: #{tpu_custom_call.1} parent=11 // pred_check_branch
          %126 = sbr.rel (%p124) target = $region16
        $region15: #{tpu_custom_call.1} parent=11 // pred_region
          _
        $region16: #{tpu_custom_call.1} parent=11 // pred_fallthru
          _
        // Predicated region
        $region17: #{tpu_custom_call.1} parent=11 // pred_check
          %p127 = pneg %p83
        $region18: #{tpu_custom_call.1} parent=11 // pred_check_branch
          %129 = sbr.rel (%p127) target = $region20
        $region19: #{tpu_custom_call.1} parent=11 // pred_region
          _
        $region20: #{tpu_custom_call.1} parent=11 // pred_fallthru
          _
      $region12: #{tpu_custom_call.1} parent=5 // pred_fallthru
        _
      %p130 = scmp.lt.s32.totalorder %s15, 2
      // Predicated region
      $region21: #{tpu_custom_call.1} parent=5 // pred_check
        %p131 = pneg %p130
      $region22: #{tpu_custom_call.1} parent=5 // pred_check_branch
        %133 = sbr.rel (%p131) target = $region24
      $region23: #{tpu_custom_call.1} parent=5 // pred_region
        // Predicated region
        $region25: #{tpu_custom_call.1} parent=23 // pred_check
          %p134 = pneg %p35
        $region26: #{tpu_custom_call.1} parent=23 // pred_check_branch
          %136 = sbr.rel (%p134) target = $region28
        $region27: #{tpu_custom_call.1} parent=23 // pred_region
          %s137 = sand.u32 %s25, 1
          %s138 = scalar_lea.sflag [#allocation3], %s137
          %s139 = sand.u32 %s25, 1
          %s140 = smul.addr %s139, 32
          %s141 = scalar_lea.vmem [#allocation2], %s140
          %s142 = smul.u32 4, %s15
          %s144 = ssub.s32 512, 512
          %145 = vsyncadd %s138, %s144
          %s146 = smul.addr %s142, 128
          %s147 = scalar_lea.hbm %s0, %s146
          %s148 = sshll.u32 %s141, 4
          %s149 = int_to_ptr.vmem [resolvable:$true] %s148
          %154 = dma.hbm_to_vmem [thread:$0]  %s147, 512, %s149, %s138, 128, 128, 8
        $region28: #{tpu_custom_call.1} parent=23 // pred_fallthru
          _
      $region24: #{tpu_custom_call.1} parent=5 // pred_fallthru
        _
      %p155 = scmp.le.s32.totalorder 1, %s15
      %p156 = scmp.lt.s32.totalorder %s15, 3
      %p157 = pnand %p155, %p156
      %p158 = pneg %p157
      // Predicated region
      $region29: #{tpu_custom_call.1} parent=5 // pred_check
        _
      $region30: #{tpu_custom_call.1} parent=5 // pred_check_branch
        %160 = sbr.rel (%p157) target = $region32
      $region31: #{tpu_custom_call.1} parent=5 // pred_region
        %s161 = ssub.s32 %s15, 1
        %s162 = sand.u32 %s28, 1
        %s163 = scalar_lea.sflag [#allocation3], %s162
        %s164 = sand.u32 %s28, 1
        %s165 = smul.addr %s164, 32
        %s166 = scalar_lea.vmem [#allocation2], %s165
        // Predicated region
        $region33: #{tpu_custom_call.1} parent=31 // pred_check
          %p167 = pneg %p41
        $region34: #{tpu_custom_call.1} parent=31 // pred_check_branch
          %169 = sbr.rel (%p167) target = $region36
        $region35: #{tpu_custom_call.1} parent=31 // pred_region
          %170 = dma.done %s163, 512
        $region36: #{tpu_custom_call.1} parent=31 // pred_fallthru
          _
        %s171 = sand.u32 %s28, 1
        %s172 = scalar_lea.sflag [#allocation3], %s171
        %s173 = sand.u32 %s28, 1
        %s174 = smul.addr %s173, 32
        %s175 = scalar_lea.vmem [#allocation2], %s174
        %p176 = pneg %p41
        %p177 = pneg %p38
        %p178 = pneg %p62
        %p179 = pneg %p59
        %p180 = pneg %p83
        %p181 = pneg %p80
        %p182 = pneg %p109
        %p183 = pneg %p106
        %s184 = sand.u32 %s96, 1
        %s185 = scalar_lea.sflag [#allocation4], %s184
        %s186 = sand.u32 %s96, 1
        %s187 = smul.addr %s186, 32
        %s188 = scalar_lea.vmem [#allocation5], %s187
        %s189 = smul.u32 4, %s20
        %s190 = smul.u32 4, %s20
        %v191 = vld [vmem:[%s1] sm:$0xff]
        %v192 = vld [vmem:[%s1 + $0x8] sm:$0xff]
        %v193 = vld [vmem:[%s1 + $0x10] sm:$0xff]
        %v194 = vld [vmem:[%s1 + $0x18] sm:$0xff]
        %v195 = vld [vmem:[%s166] sm:$0xff]
        %v196 = vld [vmem:[%s166 + $0x8] sm:$0xff]
        %v197 = vld [vmem:[%s166 + $0x10] sm:$0xff]
        %v198 = vld [vmem:[%s166 + $0x18] sm:$0xff]
        %199 = vadd.xlane.f32.xlu0 %v195
        %v200 = vpop.xlane.xlu0 %199
        %201 = vadd.xlane.f32.xlu0 %v196
        %v202 = vpop.xlane.xlu0 %201
        %203 = vadd.xlane.f32.xlu0 %v197
        %v204 = vpop.xlane.xlu0 %203
        %205 = vadd.xlane.f32.xlu0 %v198
        %v206 = vpop.xlane.xlu0 %205
        %v207 = vmul.f32 %v200, 0.0078125
        %v208 = vmul.f32 %v202, 0.0078125
        %v209 = vmul.f32 %v204, 0.0078125
        %v210 = vmul.f32 %v206, 0.0078125
        %v211 = vmul.f32 %v207, %v191
        %v212 = vmul.f32 %v208, %v192
        %v213 = vmul.f32 %v209, %v193
        %v214 = vmul.f32 %v210, %v194
        %v215 = vlaneseq
        %v216 = vand.u32 %v215, 127
        %v217 = vlaneseq
        %v218 = vshrl.u32 %v217, 7
        %v219 = vmul.u32 %v218, 16
        %vm220 = vcmp.ge.s32.totalorder %v216, %v219
        %v221 = vadd.s32 %v219, 16
        %vm222 = vcmp.lt.s32.totalorder %v216, %v221
        %vm223 = vmand %vm220, %vm222
        %v224 = vsel %vm223, 1.0, 0.0
        %v225 = vld [vmem:[%s2] sm:$0x1]
        %v227 = vlaneseq
        %v228 = vshrl.u32 %v227, 7
        %v229 = vsub.s32 0, %v228
        %v230 = vrot.slane %v225, %v229
        %vm232 = vcmask 261120
        %v234 = vsel %vm232, %v224, 0
        %236 = vmatprep.subr.mxu0 0.0
        %237 = vmatpush1.msra.mxu0 0.0
        %238 = vmatprep.subr.mxu0 0.0
        %239 = vmatpush1.msra.mxu0 0.0
        %240 = vmatprep.subr.mxu0 0.0
        %241 = vmatpush1.msra.mxu0 0.0
        %242 = vmatprep.subr.mxu0 0.0
        %243 = vmatpush1.msra.mxu0 0.0
        %244 = vmatprep.subr.mxu0 0.0
        %245 = vmatpush1.msra.mxu0 0.0
        %246 = vmatprep.subr.mxu0 0.0
        %247 = vmatpush1.msra.mxu0 0.0
        %248 = vmatprep.subr.mxu0 0.0
        %249 = vmatpush1.msra.mxu0 0.0
        %250 = vmatprep.subr.mxu0 0.0
        %251 = vmatpush1.msra.mxu0 0.0
        %252 = vmatprep.subr.mxu0 0.0
        %253 = vmatpush1.msra.mxu0 0.0
        %254 = vmatprep.subr.mxu0 0.0
        %255 = vmatpush1.msra.mxu0 0.0
        %256 = vmatprep.subr.mxu0 0.0
        %257 = vmatpush1.msra.mxu0 0.0
        %258 = vmatprep.subr.mxu0 0.0
        %259 = vmatpush1.msra.mxu0 0.0
        %260 = vmatprep.subr.mxu0 0.0
        %261 = vmatpush1.msra.mxu0 %v214
        %262 = vmatprep.subr.mxu0 0.0
        %263 = vmatpush1.msra.mxu0 %v213
        %264 = vmatprep.subr.mxu0 0.0
        %265 = vmatpush1.msra.mxu0 %v212
        %266 = vmatprep.subr.mxu0 0.0
        %267 = vmatpush1.msra.mxu0 %v211
        %268 = vmatprep.subr.mxu0 0.0
        %269 = vmatpush2.msra.mxu0 0.0
        %270 = vmatprep.subr.mxu0 0.0
        %271 = vmatpush2.msra.mxu0 0.0
        %272 = vmatprep.subr.mxu0 0.0
        %273 = vmatpush2.msra.mxu0 0.0
        %274 = vmatprep.subr.mxu0 0.0
        %275 = vmatpush2.msra.mxu0 0.0
        %276 = vmatprep.subr.mxu0 0.0
        %277 = vmatpush2.msra.mxu0 0.0
        %278 = vmatprep.subr.mxu0 0.0
        %279 = vmatpush2.msra.mxu0 0.0
        %280 = vmatprep.subr.mxu0 0.0
        %281 = vmatpush2.msra.mxu0 0.0
        %282 = vmatprep.subr.mxu0 0.0
        %283 = vmatpush2.msra.mxu0 0.0
        %284 = vmatprep.subr.mxu0 0.0
        %285 = vmatpush2.msra.mxu0 0.0
        %286 = vmatprep.subr.mxu0 0.0
        %287 = vmatpush2.msra.mxu0 0.0
        %288 = vmatprep.subr.mxu0 0.0
        %289 = vmatpush2.msra.mxu0 0.0
        %290 = vmatprep.subr.mxu0 0.0
        %291 = vmatpush2.msra.mxu0 0.0
        %292 = vmatprep.subr.mxu0 0.0
        %293 = vmatpush2.msra.mxu0 0.0
        %294 = vmatprep.subr.mxu0 0.0
        %295 = vmatpush2.msra.mxu0 0.0
        %296 = vmatprep.subr.mxu0 0.0
        %297 = vmatpush2.msra.mxu0 0.0
        %298 = vmatprep.subr.mxu0 0.0
        %299 = vmatpush2.msra.mxu0 0.0
        %300 = vmatprep.mubr.f32.mxu0 0.0
        %301 = vmatmul.mubr.f32.gmra.mxu0 %v234
        %v302 = vpop.f32.mrf.mxu0
        %v303 = vadd.f32 %v230, %v302
        %v304 = vpop.f32.mrf.mxu0
        %305 = vdwg.mxu0
        %v306 = vmax.f32 %v303, 0.0
        %v307 = vadd.s32 %v218, 8
        %v308 = vadd.s32 %v218, 16
        %v309 = vadd.s32 %v218, 24
        %v310 = vmul.u32 %v216, 16
        %vm311 = vcmp.ge.s32.totalorder %v218, %v310
        %vm312 = vcmp.ge.s32.totalorder %v307, %v310
        %vm313 = vcmp.ge.s32.totalorder %v308, %v310
        %vm314 = vcmp.ge.s32.totalorder %v309, %v310
        %v315 = vadd.s32 %v310, 16
        %vm316 = vcmp.lt.s32.totalorder %v218, %v315
        %vm317 = vcmp.lt.s32.totalorder %v307, %v315
        %vm318 = vcmp.lt.s32.totalorder %v308, %v315
        %vm319 = vcmp.lt.s32.totalorder %v309, %v315
        %vm320 = vmand %vm311, %vm316
        %vm321 = vmand %vm312, %vm317
        %vm322 = vmand %vm313, %vm318
        %vm323 = vmand %vm314, %vm319
        %v324 = vsel %vm320, 1.0, 0.0
        %v325 = vsel %vm321, 1.0, 0.0
        %v326 = vsel %vm322, 1.0, 0.0
        %v327 = vsel %vm323, 1.0, 0.0
        %vm328 = vcmask 15360
        %v330 = vsel %vm328, %v324, 0
        %v333 = vsel %vm328, %v325, 0
        %v336 = vsel %vm328, %v326, 0
        %v339 = vsel %vm328, %v327, 0
        %vm341 = vcmask 1041408
        %v343 = vsel %vm341, %v306, 0
        %345 = vmatprep.subr.mxu0 0.0
        %346 = vmatpush1.msra.mxu0 0.0
        %347 = vmatprep.subr.mxu0 0.0
        %348 = vmatpush1.msra.mxu0 0.0
        %349 = vmatprep.subr.mxu0 0.0
        %350 = vmatpush1.msra.mxu0 0.0
        %351 = vmatprep.subr.mxu0 0.0
        %352 = vmatpush1.msra.mxu0 0.0
        %353 = vmatprep.subr.mxu0 0.0
        %354 = vmatpush1.msra.mxu0 0.0
        %355 = vmatprep.subr.mxu0 0.0
        %356 = vmatpush1.msra.mxu0 0.0
        %357 = vmatprep.subr.mxu0 0.0
        %358 = vmatpush1.msra.mxu0 0.0
        %359 = vmatprep.subr.mxu0 0.0
        %360 = vmatpush1.msra.mxu0 0.0
        %361 = vmatprep.subr.mxu0 0.0
        %362 = vmatpush1.msra.mxu0 0.0
        %363 = vmatprep.subr.mxu0 0.0
        %364 = vmatpush1.msra.mxu0 0.0
        %365 = vmatprep.subr.mxu0 0.0
        %366 = vmatpush1.msra.mxu0 0.0
        %367 = vmatprep.subr.mxu0 0.0
        %368 = vmatpush1.msra.mxu0 0.0
        %369 = vmatprep.subr.mxu0 0.0
        %370 = vmatpush1.msra.mxu0 0.0
        %371 = vmatprep.subr.mxu0 0.0
        %372 = vmatpush1.msra.mxu0 0.0
        %373 = vmatprep.subr.mxu0 0.0
        %374 = vmatpush1.msra.mxu0 0.0
        %375 = vmatprep.subr.mxu0 0.0
        %376 = vmatpush1.msra.mxu0 %v343
        %377 = vmatprep.subr.mxu0 0.0
        %378 = vmatpush2.msra.mxu0 0.0
        %379 = vmatprep.subr.mxu0 0.0
        %380 = vmatpush2.msra.mxu0 0.0
        %381 = vmatprep.subr.mxu0 0.0
        %382 = vmatpush2.msra.mxu0 0.0
        %383 = vmatprep.subr.mxu0 0.0
        %384 = vmatpush2.msra.mxu0 0.0
        %385 = vmatprep.subr.mxu0 0.0
        %386 = vmatpush2.msra.mxu0 0.0
        %387 = vmatprep.subr.mxu0 0.0
        %388 = vmatpush2.msra.mxu0 0.0
        %389 = vmatprep.subr.mxu0 0.0
        %390 = vmatpush2.msra.mxu0 0.0
        %391 = vmatprep.subr.mxu0 0.0
        %392 = vmatpush2.msra.mxu0 0.0
        %393 = vmatprep.subr.mxu0 0.0
        %394 = vmatpush2.msra.mxu0 0.0
        %395 = vmatprep.subr.mxu0 0.0
        %396 = vmatpush2.msra.mxu0 0.0
        %397 = vmatprep.subr.mxu0 0.0
        %398 = vmatpush2.msra.mxu0 0.0
        %399 = vmatprep.subr.mxu0 0.0
        %400 = vmatpush2.msra.mxu0 0.0
        %401 = vmatprep.subr.mxu0 0.0
        %402 = vmatpush2.msra.mxu0 0.0
        %403 = vmatprep.subr.mxu0 0.0
        %404 = vmatpush2.msra.mxu0 0.0
        %405 = vmatprep.subr.mxu0 0.0
        %406 = vmatpush2.msra.mxu0 0.0
        %407 = vmatprep.subr.mxu0 0.0
        %408 = vmatpush2.msra.mxu0 0.0
        %409 = vmatprep.mubr.f32.mxu0 0.0
        %410 = vmatmul.mubr.f32.gmra.mxu0 %v330
        %v411 = vpop.f32.mrf.mxu0
        %v412 = vadd.f32 0.0, %v411
        %v413 = vpop.f32.mrf.mxu0
        %414 = vmatprep.mubr.f32.mxu0 0.0
        %415 = vmatmul.mubr.f32.gmra.mxu0 %v333
        %v416 = vpop.f32.mrf.mxu0
        %v417 = vadd.f32 0.0, %v416
        %v418 = vpop.f32.mrf.mxu0
        %419 = vmatprep.mubr.f32.mxu0 0.0
        %420 = vmatmul.mubr.f32.gmra.mxu0 %v336
        %v421 = vpop.f32.mrf.mxu0
        %v422 = vadd.f32 0.0, %v421
        %v423 = vpop.f32.mrf.mxu0
        %424 = vmatprep.mubr.f32.mxu0 0.0
        %425 = vmatmul.mubr.f32.gmra.mxu0 %v339
        %v426 = vpop.f32.mrf.mxu0
        %v427 = vadd.f32 0.0, %v426
        %v428 = vpop.f32.mrf.mxu0
        %429 = vdwg.mxu0
        %434 = vrot.lane.b32.xlu0 %v191, 124
        %v435 = vpop.permute.xlu0 %434
        %436 = vrot.lane.b32.xlu0 %v192, 124
        %v437 = vpop.permute.xlu0 %436
        %438 = vrot.lane.b32.xlu0 %v193, 124
        %v439 = vpop.permute.xlu0 %438
        %440 = vrot.lane.b32.xlu0 %v194, 124
        %v441 = vpop.permute.xlu0 %440
        %v446 = vmul.f32 %v412, %v435
        %v447 = vmul.f32 %v417, %v437
        %v448 = vmul.f32 %v422, %v439
        %v449 = vmul.f32 %v427, %v441
        %vm450 = vcmask 31744
        %v451 = vsel %vm450, %v446, 0.0
        %452 = vadd.xlane.f32.xlu0 %v451
        %v453 = vpop.xlane.xlu0 %452
        %v454 = vsel %vm450, %v447, 0.0
        %455 = vadd.xlane.f32.xlu0 %v454
        %v456 = vpop.xlane.xlu0 %455
        %v457 = vsel %vm450, %v448, 0.0
        %458 = vadd.xlane.f32.xlu0 %v457
        %v459 = vpop.xlane.xlu0 %458
        %v460 = vsel %vm450, %v449, 0.0
        %461 = vadd.xlane.f32.xlu0 %v460
        %v462 = vpop.xlane.xlu0 %461
        %v463 = vadd.f32 %v453, %v191
        %v464 = vadd.f32 %v456, %v192
        %v465 = vadd.f32 %v459, %v193
        %v466 = vadd.f32 %v462, %v194
        %467 = vrot.lane.b32.xlu0 %v195, 1
        %v468 = vpop.permute.xlu0 %467
        %469 = vrot.lane.b32.xlu0 %v196, 1
        %v470 = vpop.permute.xlu0 %469
        %471 = vrot.lane.b32.xlu0 %v197, 1
        %v472 = vpop.permute.xlu0 %471
        %473 = vrot.lane.b32.xlu0 %v198, 1
        %v474 = vpop.permute.xlu0 %473
        %v475 = vadd.s32 %v216, 4294967295
        %vm476 = vcmp.ge.s32.totalorder %v475, 0
        %vm477 = vcmp.lt.s32.totalorder %v475, 128
        %vm478 = vmand %vm476, %vm477
        %v479 = vsel %vm478, %v468, 0.0
        %v480 = vsel %vm478, %v470, 0.0
        %v481 = vsel %vm478, %v472, 0.0
        %v482 = vsel %vm478, %v474, 0.0
        %484 = vset.pattern.permute.xlu0 16
        %485 = vperm.xlu0 %484, %v463
        %v486 = vpop.permute.xlu0 %485
        %489 = vset.pattern.permute.xlu0 16
        %490 = vperm.xlu0 %489, %v464
        %v491 = vpop.permute.xlu0 %490
        %494 = vset.pattern.permute.xlu0 16
        %495 = vperm.xlu0 %494, %v465
        %v496 = vpop.permute.xlu0 %495
        %499 = vset.pattern.permute.xlu0 16
        %500 = vperm.xlu0 %499, %v466
        %v501 = vpop.permute.xlu0 %500
        %v503 = vmul.f32 %v486, %v479
        %v504 = vmul.f32 %v491, %v480
        %v505 = vmul.f32 %v496, %v481
        %v506 = vmul.f32 %v501, %v482
        %507 = vrot.lane.b32.xlu0 %v191, 120
        %v508 = vpop.permute.xlu0 %507
        %509 = vrot.lane.b32.xlu0 %v192, 120
        %v510 = vpop.permute.xlu0 %509
        %511 = vrot.lane.b32.xlu0 %v193, 120
        %v512 = vpop.permute.xlu0 %511
        %513 = vrot.lane.b32.xlu0 %v194, 120
        %v514 = vpop.permute.xlu0 %513
        %v519 = vmul.f32 %v412, %v508
        %v520 = vmul.f32 %v417, %v510
        %v521 = vmul.f32 %v422, %v512
        %v522 = vmul.f32 %v427, %v514
        %v523 = vsel %vm450, %v519, 0.0
        %524 = vadd.xlane.f32.xlu0 %v523
        %v525 = vpop.xlane.xlu0 %524
        %v526 = vsel %vm450, %v520, 0.0
        %527 = vadd.xlane.f32.xlu0 %v526
        %v528 = vpop.xlane.xlu0 %527
        %v529 = vsel %vm450, %v521, 0.0
        %530 = vadd.xlane.f32.xlu0 %v529
        %v531 = vpop.xlane.xlu0 %530
        %v532 = vsel %vm450, %v522, 0.0
        %533 = vadd.xlane.f32.xlu0 %v532
        %v534 = vpop.xlane.xlu0 %533
        %v535 = vadd.f32 %v525, %v191
        %v536 = vadd.f32 %v528, %v192
        %v537 = vadd.f32 %v531, %v193
        %v538 = vadd.f32 %v534, %v194
        %540 = vset.pattern.permute.xlu0 17
        %541 = vperm.xlu0 %540, %v535
        %v542 = vpop.permute.xlu0 %541
        %545 = vset.pattern.permute.xlu0 17
        %546 = vperm.xlu0 %545, %v536
        %v547 = vpop.permute.xlu0 %546
        %550 = vset.pattern.permute.xlu0 17
        %551 = vperm.xlu0 %550, %v537
        %v552 = vpop.permute.xlu0 %551
        %555 = vset.pattern.permute.xlu0 17
        %556 = vperm.xlu0 %555, %v538
        %v557 = vpop.permute.xlu0 %556
        %v559 = vmul.f32 %v542, %v195
        %v560 = vmul.f32 %v547, %v196
        %v561 = vmul.f32 %v552, %v197
        %v562 = vmul.f32 %v557, %v198
        %v563 = vadd.f32 %v503, %v559
        %v564 = vadd.f32 %v504, %v560
        %v565 = vadd.f32 %v505, %v561
        %v566 = vadd.f32 %v506, %v562
        %567 = vrot.lane.b32.xlu0 %v191, 116
        %v568 = vpop.permute.xlu0 %567
        %569 = vrot.lane.b32.xlu0 %v192, 116
        %v570 = vpop.permute.xlu0 %569
        %571 = vrot.lane.b32.xlu0 %v193, 116
        %v572 = vpop.permute.xlu0 %571
        %573 = vrot.lane.b32.xlu0 %v194, 116
        %v574 = vpop.permute.xlu0 %573
        %v579 = vmul.f32 %v412, %v568
        %v580 = vmul.f32 %v417, %v570
        %v581 = vmul.f32 %v422, %v572
        %v582 = vmul.f32 %v427, %v574
        %v583 = vsel %vm450, %v579, 0.0
        %584 = vadd.xlane.f32.xlu0 %v583
        %v585 = vpop.xlane.xlu0 %584
        %v586 = vsel %vm450, %v580, 0.0
        %587 = vadd.xlane.f32.xlu0 %v586
        %v588 = vpop.xlane.xlu0 %587
        %v589 = vsel %vm450, %v581, 0.0
        %590 = vadd.xlane.f32.xlu0 %v589
        %v591 = vpop.xlane.xlu0 %590
        %v592 = vsel %vm450, %v582, 0.0
        %593 = vadd.xlane.f32.xlu0 %v592
        %v594 = vpop.xlane.xlu0 %593
        %v595 = vadd.f32 %v585, %v191
        %v596 = vadd.f32 %v588, %v192
        %v597 = vadd.f32 %v591, %v193
        %v598 = vadd.f32 %v594, %v194
        %599 = vrot.lane.b32.xlu0 %v195, 127
        %v600 = vpop.permute.xlu0 %599
        %601 = vrot.lane.b32.xlu0 %v196, 127
        %v602 = vpop.permute.xlu0 %601
        %603 = vrot.lane.b32.xlu0 %v197, 127
        %v604 = vpop.permute.xlu0 %603
        %605 = vrot.lane.b32.xlu0 %v198, 127
        %v606 = vpop.permute.xlu0 %605
        %v607 = vadd.s32 %v216, 1
        %vm608 = vcmp.ge.s32.totalorder %v607, 0
        %vm609 = vcmp.lt.s32.totalorder %v607, 128
        %vm610 = vmand %vm608, %vm609
        %v611 = vsel %vm610, %v600, 0.0
        %v612 = vsel %vm610, %v602, 0.0
        %v613 = vsel %vm610, %v604, 0.0
        %v614 = vsel %vm610, %v606, 0.0
        %616 = vset.pattern.permute.xlu0 18
        %617 = vperm.xlu0 %616, %v595
        %v618 = vpop.permute.xlu0 %617
        %621 = vset.pattern.permute.xlu0 18
        %622 = vperm.xlu0 %621, %v596
        %v623 = vpop.permute.xlu0 %622
        %626 = vset.pattern.permute.xlu0 18
        %627 = vperm.xlu0 %626, %v597
        %v628 = vpop.permute.xlu0 %627
        %631 = vset.pattern.permute.xlu0 18
        %632 = vperm.xlu0 %631, %v598
        %v633 = vpop.permute.xlu0 %632
        %v635 = vmul.f32 %v618, %v611
        %v636 = vmul.f32 %v623, %v612
        %v637 = vmul.f32 %v628, %v613
        %v638 = vmul.f32 %v633, %v614
        %v639 = vadd.f32 %v563, %v635
        %v640 = vadd.f32 %v564, %v636
        %v641 = vadd.f32 %v565, %v637
        %v642 = vadd.f32 %v566, %v638
        %643 = vset.pattern.permute.xlu0 19
        %644 = vperm.xlu0 %643, %v191
        %v645 = vpop.permute.xlu0 %644
        %647 = vset.pattern.permute.xlu0 19
        %648 = vperm.xlu0 %647, %v192
        %v649 = vpop.permute.xlu0 %648
        %651 = vset.pattern.permute.xlu0 19
        %652 = vperm.xlu0 %651, %v193
        %v653 = vpop.permute.xlu0 %652
        %655 = vset.pattern.permute.xlu0 19
        %656 = vperm.xlu0 %655, %v194
        %v657 = vpop.permute.xlu0 %656
        %v659 = vadd.f32 %v639, %v645
        %v660 = vadd.f32 %v640, %v649
        %v661 = vadd.f32 %v641, %v653
        %v662 = vadd.f32 %v642, %v657
        %663 = vst [vmem:[%s188] sm:$0xff] %v659
        %664 = vst [vmem:[%s188 + $0x8] sm:$0xff] %v660
        %665 = vst [vmem:[%s188 + $0x10] sm:$0xff] %v661
        %666 = vst [vmem:[%s188 + $0x18] sm:$0xff] %v662
        %s667 = sand.u32 %s96, 1
        %s668 = scalar_lea.sflag [#allocation4], %s667
        %s669 = sand.u32 %s96, 1
        %s670 = smul.addr %s669, 32
        %s671 = scalar_lea.vmem [#allocation5], %s670
        // Predicated region
        $region37: #{tpu_custom_call.1} parent=31 // pred_check
          %p672 = pneg %p106
        $region38: #{tpu_custom_call.1} parent=31 // pred_check_branch
          %674 = sbr.rel (%p672) target = $region40
        $region39: #{tpu_custom_call.1} parent=31 // pred_region
          %s675 = smul.u32 4, %s20
          %s677 = ssub.s32 512, 512
          %678 = vsyncadd %s668, %s677
          %s679 = smul.addr %s675, 128
          %s680 = scalar_lea.hbm %s3, %s679
          %s681 = sshll.u32 %s671, 4
          %s682 = int_to_ptr.vmem [resolvable:$true] %s681
          %687 = dma.vmem_to_hbm [thread:$0]  %s682, 512, %s680, %s668, 128, 128, 8
        $region40: #{tpu_custom_call.1} parent=31 // pred_fallthru
          _
      $region32: #{tpu_custom_call.1} parent=5 // pred_fallthru
        _
      %p688 = scmp.le.s32.totalorder 2, %s15
      // Predicated region
      $region41: #{tpu_custom_call.1} parent=5 // pred_check
        %p689 = pneg %p688
      $region42: #{tpu_custom_call.1} parent=5 // pred_check_branch
        %691 = sbr.rel (%p689) target = $region44
      $region43: #{tpu_custom_call.1} parent=5 // pred_region
        %s692 = ssub.s32 %s15, 2
        // Predicated region
        $region45: #{tpu_custom_call.1} parent=43 // pred_check
          %p693 = pneg %p112
        $region46: #{tpu_custom_call.1} parent=43 // pred_check_branch
          %695 = sbr.rel (%p693) target = $region48
        $region47: #{tpu_custom_call.1} parent=43 // pred_region
          %s696 = sand.u32 %s97, 1
          %s697 = scalar_lea.sflag [#allocation4], %s696
          %s698 = sand.u32 %s97, 1
          %s699 = smul.addr %s698, 32
          %s700 = scalar_lea.vmem [#allocation5], %s699
          %701 = dma.done %s697, 512
        $region48: #{tpu_custom_call.1} parent=43 // pred_fallthru
          _
      $region44: #{tpu_custom_call.1} parent=5 // pred_fallthru
        _
    $region6: #{tpu_custom_call.1} parent=1 // loop_footer
      %s19 = sadd.s32 1, %s15
    $region7: #{tpu_custom_call.1} parent=1 // loop_footer_branch
      %14 = sbr.rel target = $region3
    $region8: #{tpu_custom_call.1} parent=1 // loop_exit
      _
    %702 = vsyncpa [#allocation3], 1
    %s703 = scalar_lea.sflag [#allocation3], 1
    %704 = vsyncpa %s703, 1
    %705 = vsyncpa [#allocation4], 1
    %s706 = scalar_lea.sflag [#allocation4], 1
    %707 = vsyncpa %s706, 1

</llo_original>
